<compile_context>
chip_gen: v6e
topology: v6e:2x2x1
jax: 0.10.0
libtpu: 0.0.40
codegen_flags: <defaults>
</compile_context>

<pallas_src>
import jax
import jax.numpy as jnp
from jax.experimental import pallas as pl
from jax.experimental.pallas import tpu as pltpu


def _round_up(n, m):
    return ((n + m - 1) // m) * m


def _make_temporal_block_kernel(*, seq_len, kernel_size, dilation, identity_residual):
    """Builds the kernel body.  Refs (all channel-padded to multiples of 128):

      x_ref  : (Mt, Cp_in)  bf16   Mt = batch_block * seq_len (flattened rows)
      w1_ref : (K, Cp_in, Cp_out)  bf16
      b1_ref : (1, Cp_out)         f32
      w2_ref : (K, Cp_out, Cp_out) bf16
      b2_ref : (1, Cp_out)         f32
      wd_ref : (Cp_in, Cp_out)     bf16   (only when a downsample conv exists)
      bd_ref : (1, Cp_out)         f32    (only when a downsample conv exists)
      o_ref  : (Mt, Cp_out)        f32
    """
    pad = (kernel_size - 1) * dilation

    def body(x_ref, w1_ref, b1_ref, w2_ref, b2_ref, wd_ref, bd_ref, o_ref):
        mt = x_ref.shape[0]
        # Position of each flattened row within its batch element.  Rows with
        # t < shift must see zeros (causal left padding); the same mask also
        # kills any cross-batch bleed introduced by rolling the flattened rows.
        row_t = jax.lax.broadcasted_iota(jnp.int32, (mt, 1), 0) % seq_len

        def causal_conv(inp_bf16, w_ref, b_ref):
            # Causal dilated conv(pad) + chomp(pad) == sum over K taps of a
            # row-shifted matmul.  Row shifts commute with (M,Cin)@(Cin,Cout),
            # so: one full lane-dense MXU matmul per tap, then an XLU roll of
            # the result + position mask.  No padded copies are materialised.
            n_out = w_ref.shape[2]
            acc = jnp.zeros((mt, n_out), jnp.float32)
            for j in range(kernel_size):
                shift = pad - j * dilation
                y = jnp.dot(inp_bf16, w_ref[j],
                            preferred_element_type=jnp.float32)
                if shift:
                    y = jnp.where(row_t >= shift,
                                  pltpu.roll(y, shift, axis=0),
                                  0.0)
                acc = acc + y
            return acc + b_ref[...]

        x = x_ref[...]                                             # (Mt, Cp_in) bf16
        h1 = jnp.maximum(causal_conv(x, w1_ref, b1_ref), 0.0)      # f32
        # TODO(synk): dropout1 / dropout2 are identity (inference / eval mode).
        h2 = jnp.maximum(causal_conv(h1.astype(jnp.bfloat16), w2_ref, b2_ref), 0.0)

        if identity_residual:
            # downsample is None -> add input directly; no eye-weight matmul.
            res = x.astype(jnp.float32)
        else:
            res = jnp.dot(x, wd_ref[...],
                          preferred_element_type=jnp.float32) + bd_ref[...]

        o_ref[...] = jnp.maximum(h2 + res, 0.0)

    if identity_residual:
        def kernel(x_ref, w1_ref, b1_ref, w2_ref, b2_ref, o_ref):
            body(x_ref, w1_ref, b1_ref, w2_ref, b2_ref, None, None, o_ref)
    else:
        def kernel(x_ref, w1_ref, b1_ref, w2_ref, b2_ref, wd_ref, bd_ref, o_ref):
            body(x_ref, w1_ref, b1_ref, w2_ref, b2_ref, wd_ref, bd_ref, o_ref)
    return kernel


def temporal_block_forward_nlc(x_nlc, params, *, kernel_size, dilation,
                               block_batch=None):
    """Channel-last core.  x_nlc: (B, L, C_in) f32 -> (B, L, C_out) f32.

    Use this entry point directly when stacking TemporalBlocks so intermediate
    NCL<->NLC transposes are avoided.
    """
    w1, b1, w2, b2 = params["w1"], params["b1"], params["w2"], params["b2"]
    wd, bd = params.get("wd"), params.get("bd")
    identity = wd is None

    B, L, c_in = x_nlc.shape
    K = kernel_size
    c_out = w1.shape[2]
    if identity and c_in != c_out:
        raise ValueError("identity residual requires n_inputs == n_outputs")

    # Lane-dense channel padding (multiples of 128).
    cp_in = _round_up(c_in, 128)
    cp_out = _round_up(c_out, 128)

    # Batch elements per grid step.  Default: all of B in one step (maximum
    # MXU M per step).  On v7x with larger B, pass block_batch=B//2 so the
    # 'parallel' grid axis has >= 2 steps and both TensorCores are used.
    bt = B if block_batch is None else int(block_batch)
    if B % bt != 0:
        raise ValueError("block_batch must divide the batch size")
    mt = bt * L
    if bt != B and mt % 8 != 0:
        raise ValueError("block rows (block_batch * L) must be a multiple of 8")

    f32, bf16 = jnp.float32, jnp.bfloat16
    # bf16 matmul inputs (f32 accumulation in-kernel); biases stay f32.
    x2 = jnp.pad(x_nlc.reshape(B * L, c_in).astype(bf16),
                 ((0, 0), (0, cp_in - c_in)))
    w1p = jnp.pad(w1.astype(bf16),
                  ((0, 0), (0, cp_in - c_in), (0, cp_out - c_out)))
    w2p = jnp.pad(w2.astype(bf16),
                  ((0, 0), (0, cp_out - c_out), (0, cp_out - c_out)))
    b1p = jnp.pad(b1.astype(f32), ((0, 0), (0, cp_out - c_out)))
    b2p = jnp.pad(b2.astype(f32), ((0, 0), (0, cp_out - c_out)))

    # Constant index maps keep the (small) weight blocks resident in VMEM
    # across grid steps instead of being re-DMA'd per step.
    args = [x2, w1p, b1p, w2p, b2p]
    in_specs = [
        pl.BlockSpec((mt, cp_in), lambda i: (i, 0)),
        pl.BlockSpec((K, cp_in, cp_out), lambda i: (0, 0, 0)),
        pl.BlockSpec((1, cp_out), lambda i: (0, 0)),
        pl.BlockSpec((K, cp_out, cp_out), lambda i: (0, 0, 0)),
        pl.BlockSpec((1, cp_out), lambda i: (0, 0)),
    ]
    if not identity:
        wdp = jnp.pad(wd.astype(bf16), ((0, cp_in - c_in), (0, cp_out - c_out)))
        bdp = jnp.pad(bd.astype(f32), ((0, 0), (0, cp_out - c_out)))
        args += [wdp, bdp]
        in_specs += [pl.BlockSpec((cp_in, cp_out), lambda i: (0, 0)),
                     pl.BlockSpec((1, cp_out), lambda i: (0, 0))]

    kern = _make_temporal_block_kernel(seq_len=L, kernel_size=K,
                                       dilation=dilation,
                                       identity_residual=identity)

    out = pl.pallas_call(
        kern,
        out_shape=jax.ShapeDtypeStruct((B * L, cp_out), jnp.float32),
        grid_spec=pltpu.PrefetchScalarGridSpec(
            num_scalar_prefetch=0,
            grid=(B // bt,),
            in_specs=in_specs,
            out_specs=pl.BlockSpec((mt, cp_out), lambda i: (i, 0)),
        ),
        compiler_params=pltpu.CompilerParams(
            dimension_semantics=("parallel",)),
    )(*args)

    return out[:, :c_out].reshape(B, L, c_out)


def temporal_block_forward(x_ncl, params, *, kernel_size, dilation,
                           block_batch=None):
    """PyTorch-layout wrapper: x_ncl (B, C_in, L) -> (B, C_out, L).

    In a stacked TCN prefer temporal_block_forward_nlc and keep the NLC layout
    end-to-end; the transposes here exist only for interface parity.
    """
    x_nlc = jnp.transpose(x_ncl, (0, 2, 1)).astype(jnp.float32)
    y_nlc = temporal_block_forward_nlc(x_nlc, params, kernel_size=kernel_size,
                                       dilation=dilation,
                                       block_batch=block_batch)
    return jnp.transpose(y_nlc, (0, 2, 1))


def make_params(key, n_inputs, n_outputs, kernel_size):
    """Deterministic synthetic parameters mirroring the module init.

    weight_norm: effective W = g * v / ||v||_2 (norm over (in, k) per output
    channel), with v ~ N(0, 0.01) and g = ||v|| at init.  Weights are stored
    kernel-layout (K, C_in, C_out); PyTorch stores (C_out, C_in, K).
    """
    ks = jax.random.split(key, 6)

    def weight_normed(k, c_in, c_out):
        v = 0.01 * jax.random.normal(k, (c_out, c_in, kernel_size), jnp.float32)
        norm = jnp.sqrt(jnp.sum(v * v, axis=(1, 2), keepdims=True))
        g = norm                              # init choice: g = ||v||
        w = g * v / norm                      # (C_out, C_in, K)
        return jnp.transpose(w, (2, 1, 0))    # -> (K, C_in, C_out)

    w1 = weight_normed(ks[0], n_inputs, n_outputs)
    w2 = weight_normed(ks[1], n_outputs, n_outputs)
    b1 = 0.01 * jax.random.normal(ks[2], (1, n_outputs), jnp.float32)
    b2 = 0.01 * jax.random.normal(ks[3], (1, n_outputs), jnp.float32)

    if n_inputs != n_outputs:
        wd = 0.01 * jax.random.normal(ks[4], (n_inputs, n_outputs), jnp.float32)
        bd = 0.01 * jax.random.normal(ks[5], (1, n_outputs), jnp.float32)
    else:
        wd = None   # downsample is None -> identity residual (skipped in-kernel)
        bd = None

    return dict(w1=w1, b1=b1, w2=w2, b2=b2, wd=wd, bd=bd)


def reference_forward(x_ncl, params, *, kernel_size, dilation):
    """Pure-JAX f32 reference (Conv1d + Chomp1d + ReLU chain, eval mode)."""
    w1, b1, w2, b2 = params["w1"], params["b1"], params["w2"], params["b2"]
    wd, bd = params.get("wd"), params.get("bd")
    pad = (kernel_size - 1) * dilation
    x = jnp.transpose(x_ncl, (0, 2, 1)).astype(jnp.float32)   # (B, L, C_in)
    L = x.shape[1]

    def causal_conv(inp, w, b):
        xp = jnp.pad(inp, ((0, 0), (pad, 0), (0, 0)))
        acc = jnp.zeros((inp.shape[0], L, w.shape[2]), jnp.float32)
        for j in range(kernel_size):
            acc = acc + jnp.einsum(
                "blc,cd->bld", xp[:, j * dilation:j * dilation + L, :], w[j])
        return acc + b

    h1 = jax.nn.relu(causal_conv(x, w1, b1))
    h2 = jax.nn.relu(causal_conv(h1, w2, b2))
    res = x if wd is None else jnp.einsum("blc,cd->bld", x, wd) + bd
    y = jax.nn.relu(h2 + res)
    return jnp.transpose(y, (0, 2, 1))                        # (B, C_out, L)


if __name__ == "__main__":
    # TemporalBlock(n_inputs, n_outputs, kernel_size=3, stride=1, dilation=2,
    #               padding=(3-1)*2=4, dropout=0.2) in eval mode.
    K, DIL = 3, 2
    key = jax.random.PRNGKey(0)
    k1, k2, k3, k4 = jax.random.split(key, 4)

    # bf16 matmul inputs -> loosened tolerances vs the f32 reference.
    ATOL, RTOL = 2e-2, 5e-2

    # Case 1: n_inputs != n_outputs -> 1x1-conv downsample residual.
    B, C_IN, C_OUT, L = 2, 4, 8, 16
    x = jax.random.normal(k1, (B, C_IN, L), jnp.float32)      # NCL like PyTorch
    params = make_params(k2, C_IN, C_OUT, K)
    y = jax.block_until_ready(
        temporal_block_forward(x, params, kernel_size=K, dilation=DIL))
    y_ref = reference_forward(x, params, kernel_size=K, dilation=DIL)
    assert y.shape == (B, C_OUT, L)
    assert jnp.allclose(y, y_ref, atol=ATOL, rtol=RTOL), "mismatch (downsample case)"

    # Case 2: n_inputs == n_outputs -> identity residual (no downsample matmul).
    x2 = jax.random.normal(k3, (B, C_OUT, L), jnp.float32)
    params2 = make_params(k4, C_OUT, C_OUT, K)
    y2 = jax.block_until_ready(
        temporal_block_forward(x2, params2, kernel_size=K, dilation=DIL))
    y2_ref = reference_forward(x2, params2, kernel_size=K, dilation=DIL)
    assert y2.shape == (B, C_OUT, L)
    assert jnp.allclose(y2, y2_ref, atol=ATOL, rtol=RTOL), "mismatch (identity case)"

    print("KERNEL_OK")
</pallas_src>

<mosaic_0001>
module attributes {stable_mosaic.version = 11 : i64} {
  func.func @kernel(%arg0: i32, %arg1: memref<32x128xbf16, #tpu.memory_space<vmem>>, %arg2: memref<3x128x128xbf16, #tpu.memory_space<vmem>>, %arg3: memref<1x128xf32, #tpu.memory_space<vmem>>, %arg4: memref<3x128x128xbf16, #tpu.memory_space<vmem>>, %arg5: memref<1x128xf32, #tpu.memory_space<vmem>>, %arg6: memref<128x128xbf16, #tpu.memory_space<vmem>>, %arg7: memref<1x128xf32, #tpu.memory_space<vmem>>, %arg8: memref<32x128xf32, #tpu.memory_space<vmem>>) attributes {dimension_semantics = [#tpu.dimension_semantics<parallel>], iteration_bounds = array<i64: 1>, scalar_prefetch = 0 : i64, scratch_operands = 0 : i64, tpu.core_type = #tpu.core_type<tc>, window_params = [{transform_indices = @transform_0, window_bounds = array<i64: 32, 128>}, {pipeline_mode = #tpu.pipeline_mode<synchronous>, transform_indices = @transform_1, window_bounds = array<i64: 3, 128, 128>}, {pipeline_mode = #tpu.pipeline_mode<synchronous>, transform_indices = @transform_2, window_bounds = array<i64: 1, 128>}, {pipeline_mode = #tpu.pipeline_mode<synchronous>, transform_indices = @transform_3, window_bounds = array<i64: 3, 128, 128>}, {pipeline_mode = #tpu.pipeline_mode<synchronous>, transform_indices = @transform_4, window_bounds = array<i64: 1, 128>}, {pipeline_mode = #tpu.pipeline_mode<synchronous>, transform_indices = @transform_5, window_bounds = array<i64: 128, 128>}, {pipeline_mode = #tpu.pipeline_mode<synchronous>, transform_indices = @transform_6, window_bounds = array<i64: 1, 128>}, {transform_indices = @transform_7, window_bounds = array<i64: 32, 128>}]} {
    %0 = tpu.iota {dimensions = array<i32: 0>} : vector<32x1xi32>
    %c16_i32 = arith.constant 16 : i32
    %c0_i32 = arith.constant 0 : i32
    %1 = arith.cmpi eq, %c16_i32, %c0_i32 : i32
    %c1_i32 = arith.constant 1 : i32
    %2 = arith.select %1, %c1_i32, %c16_i32 : i32
    %3 = vector.broadcast %2 : i32 to vector<32x1xi32>
    %4 = arith.remsi %0, %3 : vector<32x1xi32>
    %c0_i32_0 = arith.constant 0 : i32
    %5 = vector.broadcast %c0_i32_0 : i32 to vector<32x1xi32>
    %6 = arith.cmpi ne, %4, %5 : vector<32x1xi32>
    %c0_i32_1 = arith.constant 0 : i32
    %7 = vector.broadcast %c0_i32_1 : i32 to vector<32x1xi32>
    %8 = arith.cmpi slt, %4, %7 : vector<32x1xi32>
    %c0_i32_2 = arith.constant 0 : i32
    %9 = arith.cmpi slt, %2, %c0_i32_2 : i32
    %10 = vector.broadcast %9 : i1 to vector<32x1xi1>
    %11 = vector.broadcast %10 : vector<32x1xi1> to vector<32x1xi1>
    %12 = arith.xori %8, %11 : vector<32x1xi1>
    %13 = arith.andi %12, %6 : vector<32x1xi1>
    %14 = vector.broadcast %2 : i32 to vector<32x1xi32>
    %15 = arith.addi %4, %14 : vector<32x1xi32>
    %16 = arith.select %13, %15, %4 : vector<32x1xi1>, vector<32x1xi32>
    %c0 = arith.constant 0 : index
    %c0_3 = arith.constant 0 : index
    %17 = vector.load %arg1[%c0, %c0_3] : memref<32x128xbf16, #tpu.memory_space<vmem>>, vector<32x128xbf16>
    %cst = arith.constant 0.000000e+00 : f32
    %18 = vector.broadcast %cst : f32 to vector<32x128xf32>
    %c0_4 = arith.constant 0 : index
    %c0_5 = arith.constant 0 : index
    %c0_6 = arith.constant 0 : index
    %19 = vector.load %arg2[%c0_4, %c0_5, %c0_6] : memref<3x128x128xbf16, #tpu.memory_space<vmem>>, vector<1x128x128xbf16>
    %20 = vector.shape_cast %19 : vector<1x128x128xbf16> to vector<128x128xbf16>
    %cst_7 = arith.constant dense<0.000000e+00> : vector<32x128xf32>
    %21 = tpu.matmul %17, %20, %cst_7 {dimension_numbers = #tpu.dot_dimension_numbers<[1], [0], [0], [1], [0, 0, 1, 1], [], []>} : vector<32x128xbf16>, vector<128x128xbf16>, vector<32x128xf32> -> vector<32x128xf32>
    %c4_i32 = arith.constant 4 : i32
    %22 = vector.broadcast %c4_i32 : i32 to vector<32x1xi32>
    %23 = arith.cmpi sge, %16, %22 : vector<32x1xi32>
    %c4_i32_8 = arith.constant 4 : i32
    %24 = tpu.dynamic_rotate %21 by %c4_i32_8 dim 0 : vector<32x128xf32>, i32 -> vector<32x128xf32>
    %cst_9 = arith.constant 0.000000e+00 : f32
    %25 = vector.shape_cast %23 : vector<32x1xi1> to vector<32x1xi1>
    %26 = vector.broadcast %25 : vector<32x1xi1> to vector<32x128xi1>
    %27 = vector.broadcast %cst_9 : f32 to vector<32x128xf32>
    %28 = arith.select %26, %24, %27 : vector<32x128xi1>, vector<32x128xf32>
    %29 = arith.addf %18, %28 : vector<32x128xf32>
    %c1 = arith.constant 1 : index
    %c0_10 = arith.constant 0 : index
    %c0_11 = arith.constant 0 : index
    %30 = vector.load %arg2[%c1, %c0_10, %c0_11] : memref<3x128x128xbf16, #tpu.memory_space<vmem>>, vector<1x128x128xbf16>
    %31 = vector.shape_cast %30 : vector<1x128x128xbf16> to vector<128x128xbf16>
    %cst_12 = arith.constant dense<0.000000e+00> : vector<32x128xf32>
    %32 = tpu.matmul %17, %31, %cst_12 {dimension_numbers = #tpu.dot_dimension_numbers<[1], [0], [0], [1], [0, 0, 1, 1], [], []>} : vector<32x128xbf16>, vector<128x128xbf16>, vector<32x128xf32> -> vector<32x128xf32>
    %c2_i32 = arith.constant 2 : i32
    %33 = vector.broadcast %c2_i32 : i32 to vector<32x1xi32>
    %34 = arith.cmpi sge, %16, %33 : vector<32x1xi32>
    %c2_i32_13 = arith.constant 2 : i32
    %35 = tpu.dynamic_rotate %32 by %c2_i32_13 dim 0 : vector<32x128xf32>, i32 -> vector<32x128xf32>
    %cst_14 = arith.constant 0.000000e+00 : f32
    %36 = vector.shape_cast %34 : vector<32x1xi1> to vector<32x1xi1>
    %37 = vector.broadcast %36 : vector<32x1xi1> to vector<32x128xi1>
    %38 = vector.broadcast %cst_14 : f32 to vector<32x128xf32>
    %39 = arith.select %37, %35, %38 : vector<32x128xi1>, vector<32x128xf32>
    %40 = arith.addf %29, %39 : vector<32x128xf32>
    %c2 = arith.constant 2 : index
    %c0_15 = arith.constant 0 : index
    %c0_16 = arith.constant 0 : index
    %41 = vector.load %arg2[%c2, %c0_15, %c0_16] : memref<3x128x128xbf16, #tpu.memory_space<vmem>>, vector<1x128x128xbf16>
    %42 = vector.shape_cast %41 : vector<1x128x128xbf16> to vector<128x128xbf16>
    %cst_17 = arith.constant dense<0.000000e+00> : vector<32x128xf32>
    %43 = tpu.matmul %17, %42, %cst_17 {dimension_numbers = #tpu.dot_dimension_numbers<[1], [0], [0], [1], [0, 0, 1, 1], [], []>} : vector<32x128xbf16>, vector<128x128xbf16>, vector<32x128xf32> -> vector<32x128xf32>
    %44 = arith.addf %40, %43 : vector<32x128xf32>
    %c0_18 = arith.constant 0 : index
    %c0_19 = arith.constant 0 : index
    %45 = vector.load %arg3[%c0_18, %c0_19] : memref<1x128xf32, #tpu.memory_space<vmem>>, vector<1x128xf32>
    %46 = vector.broadcast %45 : vector<1x128xf32> to vector<32x128xf32>
    %47 = arith.addf %44, %46 : vector<32x128xf32>
    %cst_20 = arith.constant 0.000000e+00 : f32
    %48 = vector.broadcast %cst_20 : f32 to vector<32x128xf32>
    %49 = arith.maximumf %47, %48 : vector<32x128xf32>
    %50 = arith.truncf %49 : vector<32x128xf32> to vector<32x128xbf16>
    %cst_21 = arith.constant 0.000000e+00 : f32
    %51 = vector.broadcast %cst_21 : f32 to vector<32x128xf32>
    %c0_22 = arith.constant 0 : index
    %c0_23 = arith.constant 0 : index
    %c0_24 = arith.constant 0 : index
    %52 = vector.load %arg4[%c0_22, %c0_23, %c0_24] : memref<3x128x128xbf16, #tpu.memory_space<vmem>>, vector<1x128x128xbf16>
    %53 = vector.shape_cast %52 : vector<1x128x128xbf16> to vector<128x128xbf16>
    %cst_25 = arith.constant dense<0.000000e+00> : vector<32x128xf32>
    %54 = tpu.matmul %50, %53, %cst_25 {dimension_numbers = #tpu.dot_dimension_numbers<[1], [0], [0], [1], [0, 0, 1, 1], [], []>} : vector<32x128xbf16>, vector<128x128xbf16>, vector<32x128xf32> -> vector<32x128xf32>
    %c4_i32_26 = arith.constant 4 : i32
    %55 = vector.broadcast %c4_i32_26 : i32 to vector<32x1xi32>
    %56 = arith.cmpi sge, %16, %55 : vector<32x1xi32>
    %c4_i32_27 = arith.constant 4 : i32
    %57 = tpu.dynamic_rotate %54 by %c4_i32_27 dim 0 : vector<32x128xf32>, i32 -> vector<32x128xf32>
    %cst_28 = arith.constant 0.000000e+00 : f32
    %58 = vector.shape_cast %56 : vector<32x1xi1> to vector<32x1xi1>
    %59 = vector.broadcast %58 : vector<32x1xi1> to vector<32x128xi1>
    %60 = vector.broadcast %cst_28 : f32 to vector<32x128xf32>
    %61 = arith.select %59, %57, %60 : vector<32x128xi1>, vector<32x128xf32>
    %62 = arith.addf %51, %61 : vector<32x128xf32>
    %c1_29 = arith.constant 1 : index
    %c0_30 = arith.constant 0 : index
    %c0_31 = arith.constant 0 : index
    %63 = vector.load %arg4[%c1_29, %c0_30, %c0_31] : memref<3x128x128xbf16, #tpu.memory_space<vmem>>, vector<1x128x128xbf16>
    %64 = vector.shape_cast %63 : vector<1x128x128xbf16> to vector<128x128xbf16>
    %cst_32 = arith.constant dense<0.000000e+00> : vector<32x128xf32>
    %65 = tpu.matmul %50, %64, %cst_32 {dimension_numbers = #tpu.dot_dimension_numbers<[1], [0], [0], [1], [0, 0, 1, 1], [], []>} : vector<32x128xbf16>, vector<128x128xbf16>, vector<32x128xf32> -> vector<32x128xf32>
    %c2_i32_33 = arith.constant 2 : i32
    %66 = vector.broadcast %c2_i32_33 : i32 to vector<32x1xi32>
    %67 = arith.cmpi sge, %16, %66 : vector<32x1xi32>
    %c2_i32_34 = arith.constant 2 : i32
    %68 = tpu.dynamic_rotate %65 by %c2_i32_34 dim 0 : vector<32x128xf32>, i32 -> vector<32x128xf32>
    %cst_35 = arith.constant 0.000000e+00 : f32
    %69 = vector.shape_cast %67 : vector<32x1xi1> to vector<32x1xi1>
    %70 = vector.broadcast %69 : vector<32x1xi1> to vector<32x128xi1>
    %71 = vector.broadcast %cst_35 : f32 to vector<32x128xf32>
    %72 = arith.select %70, %68, %71 : vector<32x128xi1>, vector<32x128xf32>
    %73 = arith.addf %62, %72 : vector<32x128xf32>
    %c2_36 = arith.constant 2 : index
    %c0_37 = arith.constant 0 : index
    %c0_38 = arith.constant 0 : index
    %74 = vector.load %arg4[%c2_36, %c0_37, %c0_38] : memref<3x128x128xbf16, #tpu.memory_space<vmem>>, vector<1x128x128xbf16>
    %75 = vector.shape_cast %74 : vector<1x128x128xbf16> to vector<128x128xbf16>
    %cst_39 = arith.constant dense<0.000000e+00> : vector<32x128xf32>
    %76 = tpu.matmul %50, %75, %cst_39 {dimension_numbers = #tpu.dot_dimension_numbers<[1], [0], [0], [1], [0, 0, 1, 1], [], []>} : vector<32x128xbf16>, vector<128x128xbf16>, vector<32x128xf32> -> vector<32x128xf32>
    %77 = arith.addf %73, %76 : vector<32x128xf32>
    %c0_40 = arith.constant 0 : index
    %c0_41 = arith.constant 0 : index
    %78 = vector.load %arg5[%c0_40, %c0_41] : memref<1x128xf32, #tpu.memory_space<vmem>>, vector<1x128xf32>
    %79 = vector.broadcast %78 : vector<1x128xf32> to vector<32x128xf32>
    %80 = arith.addf %77, %79 : vector<32x128xf32>
    %cst_42 = arith.constant 0.000000e+00 : f32
    %81 = vector.broadcast %cst_42 : f32 to vector<32x128xf32>
    %82 = arith.maximumf %80, %81 : vector<32x128xf32>
    %c0_43 = arith.constant 0 : index
    %c0_44 = arith.constant 0 : index
    %83 = vector.load %arg6[%c0_43, %c0_44] : memref<128x128xbf16, #tpu.memory_space<vmem>>, vector<128x128xbf16>
    %cst_45 = arith.constant dense<0.000000e+00> : vector<32x128xf32>
    %84 = tpu.matmul %17, %83, %cst_45 {dimension_numbers = #tpu.dot_dimension_numbers<[1], [0], [0], [1], [0, 0, 1, 1], [], []>} : vector<32x128xbf16>, vector<128x128xbf16>, vector<32x128xf32> -> vector<32x128xf32>
    %c0_46 = arith.constant 0 : index
    %c0_47 = arith.constant 0 : index
    %85 = vector.load %arg7[%c0_46, %c0_47] : memref<1x128xf32, #tpu.memory_space<vmem>>, vector<1x128xf32>
    %86 = vector.broadcast %85 : vector<1x128xf32> to vector<32x128xf32>
    %87 = arith.addf %84, %86 : vector<32x128xf32>
    %88 = arith.addf %82, %87 : vector<32x128xf32>
    %cst_48 = arith.constant 0.000000e+00 : f32
    %89 = vector.broadcast %cst_48 : f32 to vector<32x128xf32>
    %90 = arith.maximumf %88, %89 : vector<32x128xf32>
    %c0_49 = arith.constant 0 : index
    %c0_50 = arith.constant 0 : index
    %91 = vector.load %arg8[%c0_49, %c0_50] : memref<32x128xf32, #tpu.memory_space<vmem>>, vector<32x128xf32>
    tpu.vector_store %arg8[%c0_49, %c0_50], %90 {strides = array<i32>} : memref<32x128xf32, #tpu.memory_space<vmem>>, vector<32x128xf32>,
    return
  }
  func.func @transform_0(%arg0: i32) -> (i32, i32) {
    %c0_i32 = arith.constant 0 : i32
    %c0_i32_0 = arith.constant 0 : i32
    return %arg0, %c0_i32 : i32, i32
  }
  func.func @transform_1(%arg0: i32) -> (i32, i32, i32) {
    %c0_i32 = arith.constant 0 : i32
    %c0_i32_0 = arith.constant 0 : i32
    %c0_i32_1 = arith.constant 0 : i32
    %c0_i32_2 = arith.constant 0 : i32
    return %c0_i32, %c0_i32_0, %c0_i32_1 : i32, i32, i32
  }
  func.func @transform_2(%arg0: i32) -> (i32, i32) {
    %c0_i32 = arith.constant 0 : i32
    %c0_i32_0 = arith.constant 0 : i32
    %c0_i32_1 = arith.constant 0 : i32
    return %c0_i32, %c0_i32_0 : i32, i32
  }
  func.func @transform_3(%arg0: i32) -> (i32, i32, i32) {
    %c0_i32 = arith.constant 0 : i32
    %c0_i32_0 = arith.constant 0 : i32
    %c0_i32_1 = arith.constant 0 : i32
    %c0_i32_2 = arith.constant 0 : i32
    return %c0_i32, %c0_i32_0, %c0_i32_1 : i32, i32, i32
  }
  func.func @transform_4(%arg0: i32) -> (i32, i32) {
    %c0_i32 = arith.constant 0 : i32
    %c0_i32_0 = arith.constant 0 : i32
    %c0_i32_1 = arith.constant 0 : i32
    return %c0_i32, %c0_i32_0 : i32, i32
  }
  func.func @transform_5(%arg0: i32) -> (i32, i32) {
    %c0_i32 = arith.constant 0 : i32
    %c0_i32_0 = arith.constant 0 : i32
    %c0_i32_1 = arith.constant 0 : i32
    return %c0_i32, %c0_i32_0 : i32, i32
  }
  func.func @transform_6(%arg0: i32) -> (i32, i32) {
    %c0_i32 = arith.constant 0 : i32
    %c0_i32_0 = arith.constant 0 : i32
    %c0_i32_1 = arith.constant 0 : i32
    return %c0_i32, %c0_i32_0 : i32, i32
  }
  func.func @transform_7(%arg0: i32) -> (i32, i32) {
    %c0_i32 = arith.constant 0 : i32
    %c0_i32_0 = arith.constant 0 : i32
    return %arg0, %c0_i32 : i32, i32
  }
}

</mosaic_0001>

<llo_original>
// kernel: tpu_custom_call.1
$region0: #{tpu_custom_call.1}
  #allocation0 [shape = 'u32[]', space=smem, size = 0x4, offset = 0x4, fixed_abs, tag = 'smem constant byte address 0x4 - core index']
  #allocation1 [shape = 'u32[144,128]{1,0:T(1,128)}', space=vmem, size = 0x12000, scoped, tag = 'internal scratch']
  %s0 = inlined_call_operand.hbm [shape: bf16[32,128], index: 0, kind: input, shape index: {}]
  %s1 = inlined_call_operand.hbm [shape: bf16[3,128,128], index: 1, kind: input, shape index: {}]
  %s2 = inlined_call_operand.vmem [shape: f32[1,128], index: 2, kind: input, shape index: {}]
  %s3 = inlined_call_operand.hbm [shape: bf16[3,128,128], index: 3, kind: input, shape index: {}]
  %s4 = inlined_call_operand.vmem [shape: f32[1,128], index: 4, kind: input, shape index: {}]
  %s5 = inlined_call_operand.hbm [shape: bf16[128,128], index: 5, kind: input, shape index: {}]
  %s6 = inlined_call_operand.vmem [shape: f32[1,128], index: 6, kind: input, shape index: {}]
  %s7 = inlined_call_operand.hbm [shape: f32[32,128], index: 7, kind: output, shape index: {}]
  %s8 = sld [smem:[#allocation0]]
  $region54: #{tpu_custom_call.1} parent=0
    _
  %s10 = ssub.s32 1, %s8
  %s11 = scalar_select 0, %s10, %s8
  $region1: #{tpu_custom_call.1} parent=0
    #allocation2 [shape = 'u8[8192]{0}', space=vmem, size = 0x2000, scoped, tag = 'input window, operand 0, single buffered']
    #allocation3 [shape = 's32[1]{0}', space=sflag, size = 0x4, scoped, tag = 'scoped memory for tpu_custom_call.1']
    #allocation4 [shape = 's32[1]{0}', space=sflag, size = 0x4, scoped, tag = 'scoped memory for tpu_custom_call.1']
    #allocation5 [shape = 'u8[98304]{0}', space=vmem, size = 0x18000, scoped, tag = 'input window, operand 1, single buffered']
    #allocation6 [shape = 's32[1]{0}', space=sflag, size = 0x4, scoped, tag = 'scoped memory for tpu_custom_call.1']
    #allocation7 [shape = 'u8[98304]{0}', space=vmem, size = 0x18000, scoped, tag = 'input window, operand 3, single buffered']
    #allocation8 [shape = 'u8[32768]{0}', space=vmem, size = 0x8000, scoped, tag = 'input window, operand 5, single buffered']
    #allocation9 [shape = 's32[1]{0}', space=sflag, size = 0x4, scoped, tag = 'scoped memory for tpu_custom_call.1']
    #allocation10 [shape = 'u8[16384]{0}', space=vmem, size = 0x4000, scoped, tag = 'output window, operand 0, single buffered']
    %12 = vsyncpa [#allocation3], 0
    %13 = vsyncpa [#allocation6], 0
    %14 = vsyncpa [#allocation9], 0
    %15 = vsyncpa [#allocation4], 0
    // Predicated region
    $region2: #{tpu_custom_call.1} parent=1 // pred_check
      _
    $region3: #{tpu_custom_call.1} parent=1 // pred_check_branch
      %17 = sbr.rel (0) target = $region5
    $region4: #{tpu_custom_call.1} parent=1 // pred_region
      %s19 = ssub.s32 256, 256
      %20 = vsyncadd [#allocation3], %s19
      %s21 = sshll.u32 [#allocation2], 4
      %s22 = int_to_ptr.vmem [resolvable:$true] %s21
      %27 = dma.hbm_to_vmem [thread:$0]  %s0, 256, %s22, [#allocation3], 64, 64, 4
    $region5: #{tpu_custom_call.1} parent=1 // pred_fallthru
      _
    // Predicated region
    $region6: #{tpu_custom_call.1} parent=1 // pred_check
      _
    $region7: #{tpu_custom_call.1} parent=1 // pred_check_branch
      %29 = sbr.rel (0) target = $region9
    $region8: #{tpu_custom_call.1} parent=1 // pred_region
      %s31 = ssub.s32 3072, 3072
      %32 = vsyncadd [#allocation6], %s31
      %s33 = sshll.u32 [#allocation5], 4
      %s34 = int_to_ptr.vmem [resolvable:$true] %s33
      %39 = dma.hbm_to_vmem [thread:$0]  %s1, 3072, %s34, [#allocation6], 64, 64, 4
    $region9: #{tpu_custom_call.1} parent=1 // pred_fallthru
      _
    // Predicated region
    $region10: #{tpu_custom_call.1} parent=1 // pred_check
      _
    $region11: #{tpu_custom_call.1} parent=1 // pred_check_branch
      %41 = sbr.rel (0) target = $region13
    $region12: #{tpu_custom_call.1} parent=1 // pred_region
      _
    $region13: #{tpu_custom_call.1} parent=1 // pred_fallthru
      _
    // Predicated region
    $region14: #{tpu_custom_call.1} parent=1 // pred_check
      _
    $region15: #{tpu_custom_call.1} parent=1 // pred_check_branch
      %43 = sbr.rel (0) target = $region17
    $region16: #{tpu_custom_call.1} parent=1 // pred_region
      %s45 = ssub.s32 3072, 3072
      %46 = vsyncadd [#allocation6], %s45
      %s47 = sshll.u32 [#allocation7], 4
      %s48 = int_to_ptr.vmem [resolvable:$true] %s47
      %53 = dma.hbm_to_vmem [thread:$0]  %s3, 3072, %s48, [#allocation6], 64, 64, 4
    $region17: #{tpu_custom_call.1} parent=1 // pred_fallthru
      _
    // Predicated region
    $region18: #{tpu_custom_call.1} parent=1 // pred_check
      _
    $region19: #{tpu_custom_call.1} parent=1 // pred_check_branch
      %55 = sbr.rel (0) target = $region21
    $region20: #{tpu_custom_call.1} parent=1 // pred_region
      _
    $region21: #{tpu_custom_call.1} parent=1 // pred_fallthru
      _
    // Predicated region
    $region22: #{tpu_custom_call.1} parent=1 // pred_check
      _
    $region23: #{tpu_custom_call.1} parent=1 // pred_check_branch
      %57 = sbr.rel (0) target = $region25
    $region24: #{tpu_custom_call.1} parent=1 // pred_region
      %s59 = ssub.s32 1024, 1024
      %60 = vsyncadd [#allocation9], %s59
      %s61 = sshll.u32 [#allocation8], 4
      %s62 = int_to_ptr.vmem [resolvable:$true] %s61
      %67 = dma.hbm_to_vmem [thread:$0]  %s5, 1024, %s62, [#allocation9], 64, 64, 4
    $region25: #{tpu_custom_call.1} parent=1 // pred_fallthru
      _
    // Predicated region
    $region26: #{tpu_custom_call.1} parent=1 // pred_check
      _
    $region27: #{tpu_custom_call.1} parent=1 // pred_check_branch
      %69 = sbr.rel (0) target = $region29
    $region28: #{tpu_custom_call.1} parent=1 // pred_region
      _
    $region29: #{tpu_custom_call.1} parent=1 // pred_fallthru
      _
    // Predicated region
    $region30: #{tpu_custom_call.1} parent=1 // pred_check
      _
    $region31: #{tpu_custom_call.1} parent=1 // pred_check_branch
      %71 = sbr.rel (0) target = $region33
    $region32: #{tpu_custom_call.1} parent=1 // pred_region
      %72 = dma.done [#allocation3], 256
    $region33: #{tpu_custom_call.1} parent=1 // pred_fallthru
      _
    // Predicated region
    $region34: #{tpu_custom_call.1} parent=1 // pred_check
      _
    $region35: #{tpu_custom_call.1} parent=1 // pred_check_branch
      %74 = sbr.rel (0) target = $region37
    $region36: #{tpu_custom_call.1} parent=1 // pred_region
      %75 = dma.done [#allocation6], 3072
    $region37: #{tpu_custom_call.1} parent=1 // pred_fallthru
      _
    // Predicated region
    $region38: #{tpu_custom_call.1} parent=1 // pred_check
      _
    $region39: #{tpu_custom_call.1} parent=1 // pred_check_branch
      %77 = sbr.rel (0) target = $region41
    $region40: #{tpu_custom_call.1} parent=1 // pred_region
      %78 = dma.done [#allocation6], 3072
    $region41: #{tpu_custom_call.1} parent=1 // pred_fallthru
      _
    // Predicated region
    $region42: #{tpu_custom_call.1} parent=1 // pred_check
      _
    $region43: #{tpu_custom_call.1} parent=1 // pred_check_branch
      %80 = sbr.rel (0) target = $region45
    $region44: #{tpu_custom_call.1} parent=1 // pred_region
      %81 = dma.done [#allocation9], 1024
    $region45: #{tpu_custom_call.1} parent=1 // pred_fallthru
      _
    %v83 = vlaneseq
    %v84 = vshrl.u32 %v83, 7
    %v85 = vadd.s32 %v84, 8
    %v86 = vadd.s32 %v84, 16
    %v87 = vadd.s32 %v84, 24
    %vm88 = vcmp.lt.s32.totalorder %v84, 0
    %v89 = vsub.s32 0, %v84
    %v90 = vsel %vm88, %v89, %v84
    %v91 = vshrl.u32 %v90, 4
    %v92 = vand.u32 %v90, 15
    %v93 = vsub.s32 0, %v92
    %v94 = vsel %vm88, %v93, %v92
    %vm95 = vcmp.lt.s32.totalorder %v85, 0
    %v96 = vsub.s32 0, %v85
    %v97 = vsel %vm95, %v96, %v85
    %v98 = vshrl.u32 %v97, 4
    %v99 = vand.u32 %v97, 15
    %v100 = vsub.s32 0, %v99
    %v101 = vsel %vm95, %v100, %v99
    %vm102 = vcmp.lt.s32.totalorder %v86, 0
    %v103 = vsub.s32 0, %v86
    %v104 = vsel %vm102, %v103, %v86
    %v105 = vshrl.u32 %v104, 4
    %v106 = vand.u32 %v104, 15
    %v107 = vsub.s32 0, %v106
    %v108 = vsel %vm102, %v107, %v106
    %vm109 = vcmp.lt.s32.totalorder %v87, 0
    %v110 = vsub.s32 0, %v87
    %v111 = vsel %vm109, %v110, %v87
    %v112 = vshrl.u32 %v111, 4
    %v113 = vand.u32 %v111, 15
    %v114 = vsub.s32 0, %v113
    %v115 = vsel %vm109, %v114, %v113
    %vm116 = vcmp.ne.s32.totalorder %v94, 0
    %vm117 = vcmp.ne.s32.totalorder %v101, 0
    %vm118 = vcmp.ne.s32.totalorder %v108, 0
    %vm119 = vcmp.ne.s32.totalorder %v115, 0
    %vm120 = vcmp.lt.s32.totalorder %v94, 0
    %vm121 = vcmp.lt.s32.totalorder %v101, 0
    %vm122 = vcmp.lt.s32.totalorder %v108, 0
    %vm123 = vcmp.lt.s32.totalorder %v115, 0
    %vm124 = vmand %vm120, %vm116
    %vm125 = vmand %vm121, %vm117
    %vm126 = vmand %vm122, %vm118
    %vm127 = vmand %vm123, %vm119
    %v128 = vadd.s32 %v94, 16
    %v129 = vadd.s32 %v101, 16
    %v130 = vadd.s32 %v108, 16
    %v131 = vadd.s32 %v115, 16
    %v132 = vsel %vm124, %v128, %v94
    %v133 = vsel %vm125, %v129, %v101
    %v134 = vsel %vm126, %v130, %v108
    %v135 = vsel %vm127, %v131, %v115
    %v136 = vld [vmem:[#allocation2] sm:$0xf]
    %v137 = vld [vmem:[#allocation2 + $0x4] sm:$0xf]
    %v138 = vld [vmem:[#allocation2 + $0x8] sm:$0xf]
    %v139 = vld [vmem:[#allocation2 + $0xc] sm:$0xf]
    %v140 = vld [vmem:[#allocation5] sm:$0xf]
    %v141 = vld [vmem:[#allocation5 + $0x4] sm:$0xf]
    %v142 = vld [vmem:[#allocation5 + $0x8] sm:$0xf]
    %v143 = vld [vmem:[#allocation5 + $0xc] sm:$0xf]
    %v144 = vld [vmem:[#allocation5 + $0x10] sm:$0xf]
    %v145 = vld [vmem:[#allocation5 + $0x14] sm:$0xf]
    %v146 = vld [vmem:[#allocation5 + $0x18] sm:$0xf]
    %v147 = vld [vmem:[#allocation5 + $0x1c] sm:$0xf]
    %v148 = vld [vmem:[#allocation5 + $0x20] sm:$0xf]
    %v149 = vld [vmem:[#allocation5 + $0x24] sm:$0xf]
    %v150 = vld [vmem:[#allocation5 + $0x28] sm:$0xf]
    %v151 = vld [vmem:[#allocation5 + $0x2c] sm:$0xf]
    %v152 = vld [vmem:[#allocation5 + $0x30] sm:$0xf]
    %v153 = vld [vmem:[#allocation5 + $0x34] sm:$0xf]
    %v154 = vld [vmem:[#allocation5 + $0x38] sm:$0xf]
    %v155 = vld [vmem:[#allocation5 + $0x3c] sm:$0xf]
    %v160 = vunpack.c.l.b16 %v136
    %v161 = vunpack.c.l.b16 %v137
    %v162 = vunpack.c.l.b16 %v138
    %v163 = vunpack.c.l.b16 %v139
    %v164 = vpack.c.b16 %v161, %v160
    %v165 = vpack.c.b16 %v163, %v162
    %v184 = vunpack.c.l.b16 %v140
    %v185 = vunpack.c.l.b16 %v141
    %v186 = vunpack.c.l.b16 %v142
    %v187 = vunpack.c.l.b16 %v143
    %v188 = vunpack.c.l.b16 %v144
    %v189 = vunpack.c.l.b16 %v145
    %v190 = vunpack.c.l.b16 %v146
    %v191 = vunpack.c.l.b16 %v147
    %v192 = vunpack.c.l.b16 %v148
    %v193 = vunpack.c.l.b16 %v149
    %v194 = vunpack.c.l.b16 %v150
    %v195 = vunpack.c.l.b16 %v151
    %v196 = vunpack.c.l.b16 %v152
    %v197 = vunpack.c.l.b16 %v153
    %v198 = vunpack.c.l.b16 %v154
    %v199 = vunpack.c.l.b16 %v155
    %v200 = vpack.c.b16 %v185, %v184
    %v201 = vpack.c.b16 %v187, %v186
    %v202 = vpack.c.b16 %v189, %v188
    %v203 = vpack.c.b16 %v191, %v190
    %v204 = vpack.c.b16 %v193, %v192
    %v205 = vpack.c.b16 %v195, %v194
    %v206 = vpack.c.b16 %v197, %v196
    %v207 = vpack.c.b16 %v199, %v198
    %216 = vmatprep.subr.bf16.mxu0 0
    %217 = vmatpush1.bf16.msra.mxu0 %v207
    %218 = vmatprep.subr.bf16.mxu0 0
    %219 = vmatpush1.bf16.msra.mxu0 %v206
    %220 = vmatprep.subr.bf16.mxu0 0
    %221 = vmatpush1.bf16.msra.mxu0 %v205
    %222 = vmatprep.subr.bf16.mxu0 0
    %223 = vmatpush1.bf16.msra.mxu0 %v204
    %224 = vmatprep.subr.bf16.mxu0 0
    %225 = vmatpush1.bf16.msra.mxu0 %v203
    %226 = vmatprep.subr.bf16.mxu0 0
    %227 = vmatpush1.bf16.msra.mxu0 %v202
    %228 = vmatprep.subr.bf16.mxu0 0
    %229 = vmatpush1.bf16.msra.mxu0 %v201
    %230 = vmatprep.subr.bf16.mxu0 0
    %231 = vmatpush1.bf16.msra.mxu0 %v200
    %232 = vmatprep.subr.bf16.mxu0 0
    %233 = vmatpush2.bf16.msra.mxu0 0
    %234 = vmatprep.subr.bf16.mxu0 0
    %235 = vmatpush2.bf16.msra.mxu0 0
    %236 = vmatprep.subr.bf16.mxu0 0
    %237 = vmatpush2.bf16.msra.mxu0 0
    %238 = vmatprep.subr.bf16.mxu0 0
    %239 = vmatpush2.bf16.msra.mxu0 0
    %240 = vmatprep.subr.bf16.mxu0 0
    %241 = vmatpush2.bf16.msra.mxu0 0
    %242 = vmatprep.subr.bf16.mxu0 0
    %243 = vmatpush2.bf16.msra.mxu0 0
    %244 = vmatprep.subr.bf16.mxu0 0
    %245 = vmatpush2.bf16.msra.mxu0 0
    %246 = vmatprep.subr.bf16.mxu0 0
    %247 = vmatpush2.bf16.msra.mxu0 0
    %248 = vmatprep.mubr.bf16.mxu0 0
    %249 = vmatmul.mubr.bf16.gmra.mxu0 %v164
    %v250 = vpop.f32.mrf.mxu0
    %v251 = vadd.f32 0.0, %v250
    %v252 = vpop.f32.mrf.mxu0
    %v253 = vpop.f32.mrf.mxu0
    %v254 = vadd.f32 0.0, %v253
    %v255 = vpop.f32.mrf.mxu0
    %256 = vmatprep.mubr.bf16.mxu0 0
    %257 = vmatmul.mubr.bf16.gmra.mxu0 %v165
    %v258 = vpop.f32.mrf.mxu0
    %v259 = vadd.f32 0.0, %v258
    %v260 = vpop.f32.mrf.mxu0
    %v261 = vpop.f32.mrf.mxu0
    %v262 = vadd.f32 0.0, %v261
    %v263 = vpop.f32.mrf.mxu0
    %264 = vdwg.mxu0
    %vm265 = vcmp.ge.s32.totalorder %v132, 4
    %vm266 = vcmp.ge.s32.totalorder %v133, 4
    %vm267 = vcmp.ge.s32.totalorder %v134, 4
    %vm268 = vcmp.ge.s32.totalorder %v135, 4
    %v269 = vrot.slane %v251, 4
    %v270 = vrot.slane %v254, 4
    %v271 = vrot.slane %v259, 4
    %v272 = vrot.slane %v262, 4
    %vm273 = vcmp.lt.s32.totalorder %v84, 4
    %v274 = vsel %vm273, %v271, %v272
    %v275 = vsel %vm273, %v270, %v271
    %v276 = vsel %vm273, %v269, %v270
    %v277 = vsel %vm273, %v272, %v269
    %v278 = vsel %vm265, 1, 0
    %v279 = vsel %vm266, 1, 0
    %v280 = vsel %vm267, 1, 0
    %v281 = vsel %vm268, 1, 0
    %vm282 = vcmp.eq.s32.totalorder %v278, 1
    %vm283 = vcmp.eq.s32.totalorder %v279, 1
    %vm284 = vcmp.eq.s32.totalorder %v280, 1
    %vm285 = vcmp.eq.s32.totalorder %v281, 1
    %v286 = vsel %vm282, %v277, 0.0
    %v287 = vsel %vm283, %v276, 0.0
    %v288 = vsel %vm284, %v275, 0.0
    %v289 = vsel %vm285, %v274, 0.0
    %v290 = vadd.f32 %v286, 0.0
    %v291 = vadd.f32 %v287, 0.0
    %v292 = vadd.f32 %v288, 0.0
    %v293 = vadd.f32 %v289, 0.0
    %s294 = scalar_lea.vmem [#allocation5], 64
    %v295 = vld [vmem:[%s294] sm:$0xf]
    %v296 = vld [vmem:[%s294 + $0x4] sm:$0xf]
    %v297 = vld [vmem:[%s294 + $0x8] sm:$0xf]
    %v298 = vld [vmem:[%s294 + $0xc] sm:$0xf]
    %v299 = vld [vmem:[%s294 + $0x10] sm:$0xf]
    %v300 = vld [vmem:[%s294 + $0x14] sm:$0xf]
    %v301 = vld [vmem:[%s294 + $0x18] sm:$0xf]
    %v302 = vld [vmem:[%s294 + $0x1c] sm:$0xf]
    %v303 = vld [vmem:[%s294 + $0x20] sm:$0xf]
    %v304 = vld [vmem:[%s294 + $0x24] sm:$0xf]
    %v305 = vld [vmem:[%s294 + $0x28] sm:$0xf]
    %v306 = vld [vmem:[%s294 + $0x2c] sm:$0xf]
    %v307 = vld [vmem:[%s294 + $0x30] sm:$0xf]
    %v308 = vld [vmem:[%s294 + $0x34] sm:$0xf]
    %v309 = vld [vmem:[%s294 + $0x38] sm:$0xf]
    %v310 = vld [vmem:[%s294 + $0x3c] sm:$0xf]
    %v327 = vunpack.c.l.b16 %v295
    %v328 = vunpack.c.l.b16 %v296
    %v329 = vunpack.c.l.b16 %v297
    %v330 = vunpack.c.l.b16 %v298
    %v331 = vunpack.c.l.b16 %v299
    %v332 = vunpack.c.l.b16 %v300
    %v333 = vunpack.c.l.b16 %v301
    %v334 = vunpack.c.l.b16 %v302
    %v335 = vunpack.c.l.b16 %v303
    %v336 = vunpack.c.l.b16 %v304
    %v337 = vunpack.c.l.b16 %v305
    %v338 = vunpack.c.l.b16 %v306
    %v339 = vunpack.c.l.b16 %v307
    %v340 = vunpack.c.l.b16 %v308
    %v341 = vunpack.c.l.b16 %v309
    %v342 = vunpack.c.l.b16 %v310
    %v343 = vpack.c.b16 %v328, %v327
    %v344 = vpack.c.b16 %v330, %v329
    %v345 = vpack.c.b16 %v332, %v331
    %v346 = vpack.c.b16 %v334, %v333
    %v347 = vpack.c.b16 %v336, %v335
    %v348 = vpack.c.b16 %v338, %v337
    %v349 = vpack.c.b16 %v340, %v339
    %v350 = vpack.c.b16 %v342, %v341
    %359 = vmatprep.subr.bf16.mxu0 0
    %360 = vmatpush1.bf16.msra.mxu0 %v350
    %361 = vmatprep.subr.bf16.mxu0 0
    %362 = vmatpush1.bf16.msra.mxu0 %v349
    %363 = vmatprep.subr.bf16.mxu0 0
    %364 = vmatpush1.bf16.msra.mxu0 %v348
    %365 = vmatprep.subr.bf16.mxu0 0
    %366 = vmatpush1.bf16.msra.mxu0 %v347
    %367 = vmatprep.subr.bf16.mxu0 0
    %368 = vmatpush1.bf16.msra.mxu0 %v346
    %369 = vmatprep.subr.bf16.mxu0 0
    %370 = vmatpush1.bf16.msra.mxu0 %v345
    %371 = vmatprep.subr.bf16.mxu0 0
    %372 = vmatpush1.bf16.msra.mxu0 %v344
    %373 = vmatprep.subr.bf16.mxu0 0
    %374 = vmatpush1.bf16.msra.mxu0 %v343
    %375 = vmatprep.subr.bf16.mxu0 0
    %376 = vmatpush2.bf16.msra.mxu0 0
    %377 = vmatprep.subr.bf16.mxu0 0
    %378 = vmatpush2.bf16.msra.mxu0 0
    %379 = vmatprep.subr.bf16.mxu0 0
    %380 = vmatpush2.bf16.msra.mxu0 0
    %381 = vmatprep.subr.bf16.mxu0 0
    %382 = vmatpush2.bf16.msra.mxu0 0
    %383 = vmatprep.subr.bf16.mxu0 0
    %384 = vmatpush2.bf16.msra.mxu0 0
    %385 = vmatprep.subr.bf16.mxu0 0
    %386 = vmatpush2.bf16.msra.mxu0 0
    %387 = vmatprep.subr.bf16.mxu0 0
    %388 = vmatpush2.bf16.msra.mxu0 0
    %389 = vmatprep.subr.bf16.mxu0 0
    %390 = vmatpush2.bf16.msra.mxu0 0
    %391 = vmatprep.mubr.bf16.mxu0 0
    %392 = vmatmul.mubr.bf16.gmra.mxu0 %v164
    %v393 = vpop.f32.mrf.mxu0
    %v394 = vadd.f32 0.0, %v393
    %v395 = vpop.f32.mrf.mxu0
    %v396 = vpop.f32.mrf.mxu0
    %v397 = vadd.f32 0.0, %v396
    %v398 = vpop.f32.mrf.mxu0
    %399 = vmatprep.mubr.bf16.mxu0 0
    %400 = vmatmul.mubr.bf16.gmra.mxu0 %v165
    %v401 = vpop.f32.mrf.mxu0
    %v402 = vadd.f32 0.0, %v401
    %v403 = vpop.f32.mrf.mxu0
    %v404 = vpop.f32.mrf.mxu0
    %v405 = vadd.f32 0.0, %v404
    %v406 = vpop.f32.mrf.mxu0
    %407 = vdwg.mxu0
    %vm408 = vcmp.ge.s32.totalorder %v132, 2
    %vm409 = vcmp.ge.s32.totalorder %v133, 2
    %vm410 = vcmp.ge.s32.totalorder %v134, 2
    %vm411 = vcmp.ge.s32.totalorder %v135, 2
    %v412 = vrot.slane %v394, 6
    %v413 = vrot.slane %v397, 6
    %v414 = vrot.slane %v402, 6
    %v415 = vrot.slane %v405, 6
    %vm416 = vcmp.lt.s32.totalorder %v84, 2
    %v417 = vsel %vm416, %v414, %v415
    %v418 = vsel %vm416, %v413, %v414
    %v419 = vsel %vm416, %v412, %v413
    %v420 = vsel %vm416, %v415, %v412
    %v421 = vsel %vm408, 1, 0
    %v422 = vsel %vm409, 1, 0
    %v423 = vsel %vm410, 1, 0
    %v424 = vsel %vm411, 1, 0
    %vm425 = vcmp.eq.s32.totalorder %v421, 1
    %vm426 = vcmp.eq.s32.totalorder %v422, 1
    %vm427 = vcmp.eq.s32.totalorder %v423, 1
    %vm428 = vcmp.eq.s32.totalorder %v424, 1
    %v429 = vsel %vm425, %v420, 0.0
    %v430 = vsel %vm426, %v419, 0.0
    %v431 = vsel %vm427, %v418, 0.0
    %v432 = vsel %vm428, %v417, 0.0
    %v433 = vadd.f32 %v290, %v429
    %v434 = vadd.f32 %v291, %v430
    %v435 = vadd.f32 %v292, %v431
    %v436 = vadd.f32 %v293, %v432
    %s437 = scalar_lea.vmem [#allocation5], 128
    %v438 = vld [vmem:[%s437] sm:$0xf]
    %v439 = vld [vmem:[%s437 + $0x4] sm:$0xf]
    %v440 = vld [vmem:[%s437 + $0x8] sm:$0xf]
    %v441 = vld [vmem:[%s437 + $0xc] sm:$0xf]
    %v442 = vld [vmem:[%s437 + $0x10] sm:$0xf]
    %v443 = vld [vmem:[%s437 + $0x14] sm:$0xf]
    %v444 = vld [vmem:[%s437 + $0x18] sm:$0xf]
    %v445 = vld [vmem:[%s437 + $0x1c] sm:$0xf]
    %v446 = vld [vmem:[%s437 + $0x20] sm:$0xf]
    %v447 = vld [vmem:[%s437 + $0x24] sm:$0xf]
    %v448 = vld [vmem:[%s437 + $0x28] sm:$0xf]
    %v449 = vld [vmem:[%s437 + $0x2c] sm:$0xf]
    %v450 = vld [vmem:[%s437 + $0x30] sm:$0xf]
    %v451 = vld [vmem:[%s437 + $0x34] sm:$0xf]
    %v452 = vld [vmem:[%s437 + $0x38] sm:$0xf]
    %v453 = vld [vmem:[%s437 + $0x3c] sm:$0xf]
    %v470 = vunpack.c.l.b16 %v438
    %v471 = vunpack.c.l.b16 %v439
    %v472 = vunpack.c.l.b16 %v440
    %v473 = vunpack.c.l.b16 %v441
    %v474 = vunpack.c.l.b16 %v442
    %v475 = vunpack.c.l.b16 %v443
    %v476 = vunpack.c.l.b16 %v444
    %v477 = vunpack.c.l.b16 %v445
    %v478 = vunpack.c.l.b16 %v446
    %v479 = vunpack.c.l.b16 %v447
    %v480 = vunpack.c.l.b16 %v448
    %v481 = vunpack.c.l.b16 %v449
    %v482 = vunpack.c.l.b16 %v450
    %v483 = vunpack.c.l.b16 %v451
    %v484 = vunpack.c.l.b16 %v452
    %v485 = vunpack.c.l.b16 %v453
    %v486 = vpack.c.b16 %v471, %v470
    %v487 = vpack.c.b16 %v473, %v472
    %v488 = vpack.c.b16 %v475, %v474
    %v489 = vpack.c.b16 %v477, %v476
    %v490 = vpack.c.b16 %v479, %v478
    %v491 = vpack.c.b16 %v481, %v480
    %v492 = vpack.c.b16 %v483, %v482
    %v493 = vpack.c.b16 %v485, %v484
    %502 = vmatprep.subr.bf16.mxu0 0
    %503 = vmatpush1.bf16.msra.mxu0 %v493
    %504 = vmatprep.subr.bf16.mxu0 0
    %505 = vmatpush1.bf16.msra.mxu0 %v492
    %506 = vmatprep.subr.bf16.mxu0 0
    %507 = vmatpush1.bf16.msra.mxu0 %v491
    %508 = vmatprep.subr.bf16.mxu0 0
    %509 = vmatpush1.bf16.msra.mxu0 %v490
    %510 = vmatprep.subr.bf16.mxu0 0
    %511 = vmatpush1.bf16.msra.mxu0 %v489
    %512 = vmatprep.subr.bf16.mxu0 0
    %513 = vmatpush1.bf16.msra.mxu0 %v488
    %514 = vmatprep.subr.bf16.mxu0 0
    %515 = vmatpush1.bf16.msra.mxu0 %v487
    %516 = vmatprep.subr.bf16.mxu0 0
    %517 = vmatpush1.bf16.msra.mxu0 %v486
    %518 = vmatprep.subr.bf16.mxu0 0
    %519 = vmatpush2.bf16.msra.mxu0 0
    %520 = vmatprep.subr.bf16.mxu0 0
    %521 = vmatpush2.bf16.msra.mxu0 0
    %522 = vmatprep.subr.bf16.mxu0 0
    %523 = vmatpush2.bf16.msra.mxu0 0
    %524 = vmatprep.subr.bf16.mxu0 0
    %525 = vmatpush2.bf16.msra.mxu0 0
    %526 = vmatprep.subr.bf16.mxu0 0
    %527 = vmatpush2.bf16.msra.mxu0 0
    %528 = vmatprep.subr.bf16.mxu0 0
    %529 = vmatpush2.bf16.msra.mxu0 0
    %530 = vmatprep.subr.bf16.mxu0 0
    %531 = vmatpush2.bf16.msra.mxu0 0
    %532 = vmatprep.subr.bf16.mxu0 0
    %533 = vmatpush2.bf16.msra.mxu0 0
    %534 = vmatprep.mubr.bf16.mxu0 0
    %535 = vmatmul.mubr.bf16.gmra.mxu0 %v164
    %v536 = vpop.f32.mrf.mxu0
    %v537 = vadd.f32 0.0, %v536
    %v538 = vpop.f32.mrf.mxu0
    %v539 = vpop.f32.mrf.mxu0
    %v540 = vadd.f32 0.0, %v539
    %v541 = vpop.f32.mrf.mxu0
    %542 = vmatprep.mubr.bf16.mxu0 0
    %543 = vmatmul.mubr.bf16.gmra.mxu0 %v165
    %v544 = vpop.f32.mrf.mxu0
    %v545 = vadd.f32 0.0, %v544
    %v546 = vpop.f32.mrf.mxu0
    %v547 = vpop.f32.mrf.mxu0
    %v548 = vadd.f32 0.0, %v547
    %v549 = vpop.f32.mrf.mxu0
    %550 = vdwg.mxu0
    %v551 = vadd.f32 %v433, %v537
    %v552 = vadd.f32 %v434, %v540
    %v553 = vadd.f32 %v435, %v545
    %v554 = vadd.f32 %v436, %v548
    %v555 = vld [vmem:[%s2] sm:$0x1]
    %v557 = vlaneseq
    %v558 = vshrl.u32 %v557, 7
    %v559 = vsub.s32 0, %v558
    %v560 = vrot.slane %v555, %v559
    %v562 = vadd.f32 %v551, %v560
    %v563 = vadd.f32 %v552, %v560
    %v564 = vadd.f32 %v553, %v560
    %v565 = vadd.f32 %v554, %v560
    %v566 = vmax.f32 %v562, 0.0
    %v567 = vmax.f32 %v563, 0.0
    %v568 = vmax.f32 %v564, 0.0
    %v569 = vmax.f32 %v565, 0.0
    %v570 = vpack.c.bf16 %v567, %v566
    %v571 = vpack.c.bf16 %v569, %v568
    %v572 = vld [vmem:[#allocation7] sm:$0xf]
    %v573 = vld [vmem:[#allocation7 + $0x4] sm:$0xf]
    %v574 = vld [vmem:[#allocation7 + $0x8] sm:$0xf]
    %v575 = vld [vmem:[#allocation7 + $0xc] sm:$0xf]
    %v576 = vld [vmem:[#allocation7 + $0x10] sm:$0xf]
    %v577 = vld [vmem:[#allocation7 + $0x14] sm:$0xf]
    %v578 = vld [vmem:[#allocation7 + $0x18] sm:$0xf]
    %v579 = vld [vmem:[#allocation7 + $0x1c] sm:$0xf]
    %v580 = vld [vmem:[#allocation7 + $0x20] sm:$0xf]
    %v581 = vld [vmem:[#allocation7 + $0x24] sm:$0xf]
    %v582 = vld [vmem:[#allocation7 + $0x28] sm:$0xf]
    %v583 = vld [vmem:[#allocation7 + $0x2c] sm:$0xf]
    %v584 = vld [vmem:[#allocation7 + $0x30] sm:$0xf]
    %v585 = vld [vmem:[#allocation7 + $0x34] sm:$0xf]
    %v586 = vld [vmem:[#allocation7 + $0x38] sm:$0xf]
    %v587 = vld [vmem:[#allocation7 + $0x3c] sm:$0xf]
    %v604 = vunpack.c.l.b16 %v572
    %v605 = vunpack.c.l.b16 %v573
    %v606 = vunpack.c.l.b16 %v574
    %v607 = vunpack.c.l.b16 %v575
    %v608 = vunpack.c.l.b16 %v576
    %v609 = vunpack.c.l.b16 %v577
    %v610 = vunpack.c.l.b16 %v578
    %v611 = vunpack.c.l.b16 %v579
    %v612 = vunpack.c.l.b16 %v580
    %v613 = vunpack.c.l.b16 %v581
    %v614 = vunpack.c.l.b16 %v582
    %v615 = vunpack.c.l.b16 %v583
    %v616 = vunpack.c.l.b16 %v584
    %v617 = vunpack.c.l.b16 %v585
    %v618 = vunpack.c.l.b16 %v586
    %v619 = vunpack.c.l.b16 %v587
    %v620 = vpack.c.b16 %v605, %v604
    %v621 = vpack.c.b16 %v607, %v606
    %v622 = vpack.c.b16 %v609, %v608
    %v623 = vpack.c.b16 %v611, %v610
    %v624 = vpack.c.b16 %v613, %v612
    %v625 = vpack.c.b16 %v615, %v614
    %v626 = vpack.c.b16 %v617, %v616
    %v627 = vpack.c.b16 %v619, %v618
    %636 = vmatprep.subr.bf16.mxu0 0
    %637 = vmatpush1.bf16.msra.mxu0 %v627
    %638 = vmatprep.subr.bf16.mxu0 0
    %639 = vmatpush1.bf16.msra.mxu0 %v626
    %640 = vmatprep.subr.bf16.mxu0 0
    %641 = vmatpush1.bf16.msra.mxu0 %v625
    %642 = vmatprep.subr.bf16.mxu0 0
    %643 = vmatpush1.bf16.msra.mxu0 %v624
    %644 = vmatprep.subr.bf16.mxu0 0
    %645 = vmatpush1.bf16.msra.mxu0 %v623
    %646 = vmatprep.subr.bf16.mxu0 0
    %647 = vmatpush1.bf16.msra.mxu0 %v622
    %648 = vmatprep.subr.bf16.mxu0 0
    %649 = vmatpush1.bf16.msra.mxu0 %v621
    %650 = vmatprep.subr.bf16.mxu0 0
    %651 = vmatpush1.bf16.msra.mxu0 %v620
    %652 = vmatprep.subr.bf16.mxu0 0
    %653 = vmatpush2.bf16.msra.mxu0 0
    %654 = vmatprep.subr.bf16.mxu0 0
    %655 = vmatpush2.bf16.msra.mxu0 0
    %656 = vmatprep.subr.bf16.mxu0 0
    %657 = vmatpush2.bf16.msra.mxu0 0
    %658 = vmatprep.subr.bf16.mxu0 0
    %659 = vmatpush2.bf16.msra.mxu0 0
    %660 = vmatprep.subr.bf16.mxu0 0
    %661 = vmatpush2.bf16.msra.mxu0 0
    %662 = vmatprep.subr.bf16.mxu0 0
    %663 = vmatpush2.bf16.msra.mxu0 0
    %664 = vmatprep.subr.bf16.mxu0 0
    %665 = vmatpush2.bf16.msra.mxu0 0
    %666 = vmatprep.subr.bf16.mxu0 0
    %667 = vmatpush2.bf16.msra.mxu0 0
    %668 = vmatprep.mubr.bf16.mxu0 0
    %669 = vmatmul.mubr.bf16.gmra.mxu0 %v570
    %v670 = vpop.f32.mrf.mxu0
    %v671 = vadd.f32 0.0, %v670
    %v672 = vpop.f32.mrf.mxu0
    %v673 = vpop.f32.mrf.mxu0
    %v674 = vadd.f32 0.0, %v673
    %v675 = vpop.f32.mrf.mxu0
    %676 = vmatprep.mubr.bf16.mxu0 0
    %677 = vmatmul.mubr.bf16.gmra.mxu0 %v571
    %v678 = vpop.f32.mrf.mxu0
    %v679 = vadd.f32 0.0, %v678
    %v680 = vpop.f32.mrf.mxu0
    %v681 = vpop.f32.mrf.mxu0
    %v682 = vadd.f32 0.0, %v681
    %v683 = vpop.f32.mrf.mxu0
    %684 = vdwg.mxu0
    %v685 = vrot.slane %v671, 4
    %v686 = vrot.slane %v674, 4
    %v687 = vrot.slane %v679, 4
    %v688 = vrot.slane %v682, 4
    %v689 = vsel %vm273, %v687, %v688
    %v690 = vsel %vm273, %v686, %v687
    %v691 = vsel %vm273, %v685, %v686
    %v692 = vsel %vm273, %v688, %v685
    %v693 = vsel %vm282, %v692, 0.0
    %v694 = vsel %vm283, %v691, 0.0
    %v695 = vsel %vm284, %v690, 0.0
    %v696 = vsel %vm285, %v689, 0.0
    %v697 = vadd.f32 %v693, 0.0
    %v698 = vadd.f32 %v694, 0.0
    %v699 = vadd.f32 %v695, 0.0
    %v700 = vadd.f32 %v696, 0.0
    %s701 = scalar_lea.vmem [#allocation7], 64
    %v702 = vld [vmem:[%s701] sm:$0xf]
    %v703 = vld [vmem:[%s701 + $0x4] sm:$0xf]
    %v704 = vld [vmem:[%s701 + $0x8] sm:$0xf]
    %v705 = vld [vmem:[%s701 + $0xc] sm:$0xf]
    %v706 = vld [vmem:[%s701 + $0x10] sm:$0xf]
    %v707 = vld [vmem:[%s701 + $0x14] sm:$0xf]
    %v708 = vld [vmem:[%s701 + $0x18] sm:$0xf]
    %v709 = vld [vmem:[%s701 + $0x1c] sm:$0xf]
    %v710 = vld [vmem:[%s701 + $0x20] sm:$0xf]
    %v711 = vld [vmem:[%s701 + $0x24] sm:$0xf]
    %v712 = vld [vmem:[%s701 + $0x28] sm:$0xf]
    %v713 = vld [vmem:[%s701 + $0x2c] sm:$0xf]
    %v714 = vld [vmem:[%s701 + $0x30] sm:$0xf]
    %v715 = vld [vmem:[%s701 + $0x34] sm:$0xf]
    %v716 = vld [vmem:[%s701 + $0x38] sm:$0xf]
    %v717 = vld [vmem:[%s701 + $0x3c] sm:$0xf]
    %v734 = vunpack.c.l.b16 %v702
    %v735 = vunpack.c.l.b16 %v703
    %v736 = vunpack.c.l.b16 %v704
    %v737 = vunpack.c.l.b16 %v705
    %v738 = vunpack.c.l.b16 %v706
    %v739 = vunpack.c.l.b16 %v707
    %v740 = vunpack.c.l.b16 %v708
    %v741 = vunpack.c.l.b16 %v709
    %v742 = vunpack.c.l.b16 %v710
    %v743 = vunpack.c.l.b16 %v711
    %v744 = vunpack.c.l.b16 %v712
    %v745 = vunpack.c.l.b16 %v713
    %v746 = vunpack.c.l.b16 %v714
    %v747 = vunpack.c.l.b16 %v715
    %v748 = vunpack.c.l.b16 %v716
    %v749 = vunpack.c.l.b16 %v717
    %v750 = vpack.c.b16 %v735, %v734
    %v751 = vpack.c.b16 %v737, %v736
    %v752 = vpack.c.b16 %v739, %v738
    %v753 = vpack.c.b16 %v741, %v740
    %v754 = vpack.c.b16 %v743, %v742
    %v755 = vpack.c.b16 %v745, %v744
    %v756 = vpack.c.b16 %v747, %v746
    %v757 = vpack.c.b16 %v749, %v748
    %766 = vmatprep.subr.bf16.mxu0 0
    %767 = vmatpush1.bf16.msra.mxu0 %v757
    %768 = vmatprep.subr.bf16.mxu0 0
    %769 = vmatpush1.bf16.msra.mxu0 %v756
    %770 = vmatprep.subr.bf16.mxu0 0
    %771 = vmatpush1.bf16.msra.mxu0 %v755
    %772 = vmatprep.subr.bf16.mxu0 0
    %773 = vmatpush1.bf16.msra.mxu0 %v754
    %774 = vmatprep.subr.bf16.mxu0 0
    %775 = vmatpush1.bf16.msra.mxu0 %v753
    %776 = vmatprep.subr.bf16.mxu0 0
    %777 = vmatpush1.bf16.msra.mxu0 %v752
    %778 = vmatprep.subr.bf16.mxu0 0
    %779 = vmatpush1.bf16.msra.mxu0 %v751
    %780 = vmatprep.subr.bf16.mxu0 0
    %781 = vmatpush1.bf16.msra.mxu0 %v750
    %782 = vmatprep.subr.bf16.mxu0 0
    %783 = vmatpush2.bf16.msra.mxu0 0
    %784 = vmatprep.subr.bf16.mxu0 0
    %785 = vmatpush2.bf16.msra.mxu0 0
    %786 = vmatprep.subr.bf16.mxu0 0
    %787 = vmatpush2.bf16.msra.mxu0 0
    %788 = vmatprep.subr.bf16.mxu0 0
    %789 = vmatpush2.bf16.msra.mxu0 0
    %790 = vmatprep.subr.bf16.mxu0 0
    %791 = vmatpush2.bf16.msra.mxu0 0
    %792 = vmatprep.subr.bf16.mxu0 0
    %793 = vmatpush2.bf16.msra.mxu0 0
    %794 = vmatprep.subr.bf16.mxu0 0
    %795 = vmatpush2.bf16.msra.mxu0 0
    %796 = vmatprep.subr.bf16.mxu0 0
    %797 = vmatpush2.bf16.msra.mxu0 0
    %798 = vmatprep.mubr.bf16.mxu0 0
    %799 = vmatmul.mubr.bf16.gmra.mxu0 %v570
    %v800 = vpop.f32.mrf.mxu0
    %v801 = vadd.f32 0.0, %v800
    %v802 = vpop.f32.mrf.mxu0
    %v803 = vpop.f32.mrf.mxu0
    %v804 = vadd.f32 0.0, %v803
    %v805 = vpop.f32.mrf.mxu0
    %806 = vmatprep.mubr.bf16.mxu0 0
    %807 = vmatmul.mubr.bf16.gmra.mxu0 %v571
    %v808 = vpop.f32.mrf.mxu0
    %v809 = vadd.f32 0.0, %v808
    %v810 = vpop.f32.mrf.mxu0
    %v811 = vpop.f32.mrf.mxu0
    %v812 = vadd.f32 0.0, %v811
    %v813 = vpop.f32.mrf.mxu0
    %814 = vdwg.mxu0
    %v815 = vrot.slane %v801, 6
    %v816 = vrot.slane %v804, 6
    %v817 = vrot.slane %v809, 6
    %v818 = vrot.slane %v812, 6
    %v819 = vsel %vm416, %v817, %v818
    %v820 = vsel %vm416, %v816, %v817
    %v821 = vsel %vm416, %v815, %v816
    %v822 = vsel %vm416, %v818, %v815
    %v823 = vsel %vm425, %v822, 0.0
    %v824 = vsel %vm426, %v821, 0.0
    %v825 = vsel %vm427, %v820, 0.0
    %v826 = vsel %vm428, %v819, 0.0
    %v827 = vadd.f32 %v697, %v823
    %v828 = vadd.f32 %v698, %v824
    %v829 = vadd.f32 %v699, %v825
    %v830 = vadd.f32 %v700, %v826
    %s831 = scalar_lea.vmem [#allocation7], 128
    %v832 = vld [vmem:[%s831] sm:$0xf]
    %v833 = vld [vmem:[%s831 + $0x4] sm:$0xf]
    %v834 = vld [vmem:[%s831 + $0x8] sm:$0xf]
    %v835 = vld [vmem:[%s831 + $0xc] sm:$0xf]
    %v836 = vld [vmem:[%s831 + $0x10] sm:$0xf]
    %v837 = vld [vmem:[%s831 + $0x14] sm:$0xf]
    %v838 = vld [vmem:[%s831 + $0x18] sm:$0xf]
    %v839 = vld [vmem:[%s831 + $0x1c] sm:$0xf]
    %v840 = vld [vmem:[%s831 + $0x20] sm:$0xf]
    %v841 = vld [vmem:[%s831 + $0x24] sm:$0xf]
    %v842 = vld [vmem:[%s831 + $0x28] sm:$0xf]
    %v843 = vld [vmem:[%s831 + $0x2c] sm:$0xf]
    %v844 = vld [vmem:[%s831 + $0x30] sm:$0xf]
    %v845 = vld [vmem:[%s831 + $0x34] sm:$0xf]
    %v846 = vld [vmem:[%s831 + $0x38] sm:$0xf]
    %v847 = vld [vmem:[%s831 + $0x3c] sm:$0xf]
    %v864 = vunpack.c.l.b16 %v832
    %v865 = vunpack.c.l.b16 %v833
    %v866 = vunpack.c.l.b16 %v834
    %v867 = vunpack.c.l.b16 %v835
    %v868 = vunpack.c.l.b16 %v836
    %v869 = vunpack.c.l.b16 %v837
    %v870 = vunpack.c.l.b16 %v838
    %v871 = vunpack.c.l.b16 %v839
    %v872 = vunpack.c.l.b16 %v840
    %v873 = vunpack.c.l.b16 %v841
    %v874 = vunpack.c.l.b16 %v842
    %v875 = vunpack.c.l.b16 %v843
    %v876 = vunpack.c.l.b16 %v844
    %v877 = vunpack.c.l.b16 %v845
    %v878 = vunpack.c.l.b16 %v846
    %v879 = vunpack.c.l.b16 %v847
    %v880 = vpack.c.b16 %v865, %v864
    %v881 = vpack.c.b16 %v867, %v866
    %v882 = vpack.c.b16 %v869, %v868
    %v883 = vpack.c.b16 %v871, %v870
    %v884 = vpack.c.b16 %v873, %v872
    %v885 = vpack.c.b16 %v875, %v874
    %v886 = vpack.c.b16 %v877, %v876
    %v887 = vpack.c.b16 %v879, %v878
    %896 = vmatprep.subr.bf16.mxu0 0
    %897 = vmatpush1.bf16.msra.mxu0 %v887
    %898 = vmatprep.subr.bf16.mxu0 0
    %899 = vmatpush1.bf16.msra.mxu0 %v886
    %900 = vmatprep.subr.bf16.mxu0 0
    %901 = vmatpush1.bf16.msra.mxu0 %v885
    %902 = vmatprep.subr.bf16.mxu0 0
    %903 = vmatpush1.bf16.msra.mxu0 %v884
    %904 = vmatprep.subr.bf16.mxu0 0
    %905 = vmatpush1.bf16.msra.mxu0 %v883
    %906 = vmatprep.subr.bf16.mxu0 0
    %907 = vmatpush1.bf16.msra.mxu0 %v882
    %908 = vmatprep.subr.bf16.mxu0 0
    %909 = vmatpush1.bf16.msra.mxu0 %v881
    %910 = vmatprep.subr.bf16.mxu0 0
    %911 = vmatpush1.bf16.msra.mxu0 %v880
    %912 = vmatprep.subr.bf16.mxu0 0
    %913 = vmatpush2.bf16.msra.mxu0 0
    %914 = vmatprep.subr.bf16.mxu0 0
    %915 = vmatpush2.bf16.msra.mxu0 0
    %916 = vmatprep.subr.bf16.mxu0 0
    %917 = vmatpush2.bf16.msra.mxu0 0
    %918 = vmatprep.subr.bf16.mxu0 0
    %919 = vmatpush2.bf16.msra.mxu0 0
    %920 = vmatprep.subr.bf16.mxu0 0
    %921 = vmatpush2.bf16.msra.mxu0 0
    %922 = vmatprep.subr.bf16.mxu0 0
    %923 = vmatpush2.bf16.msra.mxu0 0
    %924 = vmatprep.subr.bf16.mxu0 0
    %925 = vmatpush2.bf16.msra.mxu0 0
    %926 = vmatprep.subr.bf16.mxu0 0
    %927 = vmatpush2.bf16.msra.mxu0 0
    %928 = vmatprep.mubr.bf16.mxu0 0
    %929 = vmatmul.mubr.bf16.gmra.mxu0 %v570
    %v930 = vpop.f32.mrf.mxu0
    %v931 = vadd.f32 0.0, %v930
    %v932 = vpop.f32.mrf.mxu0
    %v933 = vpop.f32.mrf.mxu0
    %v934 = vadd.f32 0.0, %v933
    %v935 = vpop.f32.mrf.mxu0
    %936 = vmatprep.mubr.bf16.mxu0 0
    %937 = vmatmul.mubr.bf16.gmra.mxu0 %v571
    %v938 = vpop.f32.mrf.mxu0
    %v939 = vadd.f32 0.0, %v938
    %v940 = vpop.f32.mrf.mxu0
    %v941 = vpop.f32.mrf.mxu0
    %v942 = vadd.f32 0.0, %v941
    %v943 = vpop.f32.mrf.mxu0
    %944 = vdwg.mxu0
    %v945 = vadd.f32 %v827, %v931
    %v946 = vadd.f32 %v828, %v934
    %v947 = vadd.f32 %v829, %v939
    %v948 = vadd.f32 %v830, %v942
    %v949 = vld [vmem:[%s4] sm:$0x1]
    %v951 = vlaneseq
    %v952 = vshrl.u32 %v951, 7
    %v953 = vsub.s32 0, %v952
    %v954 = vrot.slane %v949, %v953
    %v956 = vadd.f32 %v945, %v954
    %v957 = vadd.f32 %v946, %v954
    %v958 = vadd.f32 %v947, %v954
    %v959 = vadd.f32 %v948, %v954
    %v960 = vmax.f32 %v956, 0.0
    %v961 = vmax.f32 %v957, 0.0
    %v962 = vmax.f32 %v958, 0.0
    %v963 = vmax.f32 %v959, 0.0
    %v964 = vld [vmem:[#allocation8] sm:$0xf]
    %v965 = vld [vmem:[#allocation8 + $0x4] sm:$0xf]
    %v966 = vld [vmem:[#allocation8 + $0x8] sm:$0xf]
    %v967 = vld [vmem:[#allocation8 + $0xc] sm:$0xf]
    %v968 = vld [vmem:[#allocation8 + $0x10] sm:$0xf]
    %v969 = vld [vmem:[#allocation8 + $0x14] sm:$0xf]
    %v970 = vld [vmem:[#allocation8 + $0x18] sm:$0xf]
    %v971 = vld [vmem:[#allocation8 + $0x1c] sm:$0xf]
    %v972 = vld [vmem:[#allocation8 + $0x20] sm:$0xf]
    %v973 = vld [vmem:[#allocation8 + $0x24] sm:$0xf]
    %v974 = vld [vmem:[#allocation8 + $0x28] sm:$0xf]
    %v975 = vld [vmem:[#allocation8 + $0x2c] sm:$0xf]
    %v976 = vld [vmem:[#allocation8 + $0x30] sm:$0xf]
    %v977 = vld [vmem:[#allocation8 + $0x34] sm:$0xf]
    %v978 = vld [vmem:[#allocation8 + $0x38] sm:$0xf]
    %v979 = vld [vmem:[#allocation8 + $0x3c] sm:$0xf]
    %v980 = vld [vmem:[%s6] sm:$0x1]
    %v982 = vlaneseq
    %v983 = vshrl.u32 %v982, 7
    %v984 = vsub.s32 0, %v983
    %v985 = vrot.slane %v980, %v984
    %v1003 = vunpack.c.l.b16 %v964
    %v1004 = vunpack.c.l.b16 %v965
    %v1005 = vunpack.c.l.b16 %v966
    %v1006 = vunpack.c.l.b16 %v967
    %v1007 = vunpack.c.l.b16 %v968
    %v1008 = vunpack.c.l.b16 %v969
    %v1009 = vunpack.c.l.b16 %v970
    %v1010 = vunpack.c.l.b16 %v971
    %v1011 = vunpack.c.l.b16 %v972
    %v1012 = vunpack.c.l.b16 %v973
    %v1013 = vunpack.c.l.b16 %v974
    %v1014 = vunpack.c.l.b16 %v975
    %v1015 = vunpack.c.l.b16 %v976
    %v1016 = vunpack.c.l.b16 %v977
    %v1017 = vunpack.c.l.b16 %v978
    %v1018 = vunpack.c.l.b16 %v979
    %v1019 = vpack.c.b16 %v1004, %v1003
    %v1020 = vpack.c.b16 %v1006, %v1005
    %v1021 = vpack.c.b16 %v1008, %v1007
    %v1022 = vpack.c.b16 %v1010, %v1009
    %v1023 = vpack.c.b16 %v1012, %v1011
    %v1024 = vpack.c.b16 %v1014, %v1013
    %v1025 = vpack.c.b16 %v1016, %v1015
    %v1026 = vpack.c.b16 %v1018, %v1017
    %1035 = vmatprep.subr.bf16.mxu0 0
    %1036 = vmatpush1.bf16.msra.mxu0 %v1026
    %1037 = vmatprep.subr.bf16.mxu0 0
    %1038 = vmatpush1.bf16.msra.mxu0 %v1025
    %1039 = vmatprep.subr.bf16.mxu0 0
    %1040 = vmatpush1.bf16.msra.mxu0 %v1024
    %1041 = vmatprep.subr.bf16.mxu0 0
    %1042 = vmatpush1.bf16.msra.mxu0 %v1023
    %1043 = vmatprep.subr.bf16.mxu0 0
    %1044 = vmatpush1.bf16.msra.mxu0 %v1022
    %1045 = vmatprep.subr.bf16.mxu0 0
    %1046 = vmatpush1.bf16.msra.mxu0 %v1021
    %1047 = vmatprep.subr.bf16.mxu0 0
    %1048 = vmatpush1.bf16.msra.mxu0 %v1020
    %1049 = vmatprep.subr.bf16.mxu0 0
    %1050 = vmatpush1.bf16.msra.mxu0 %v1019
    %1051 = vmatprep.subr.bf16.mxu0 0
    %1052 = vmatpush2.bf16.msra.mxu0 0
    %1053 = vmatprep.subr.bf16.mxu0 0
    %1054 = vmatpush2.bf16.msra.mxu0 0
    %1055 = vmatprep.subr.bf16.mxu0 0
    %1056 = vmatpush2.bf16.msra.mxu0 0
    %1057 = vmatprep.subr.bf16.mxu0 0
    %1058 = vmatpush2.bf16.msra.mxu0 0
    %1059 = vmatprep.subr.bf16.mxu0 0
    %1060 = vmatpush2.bf16.msra.mxu0 0
    %1061 = vmatprep.subr.bf16.mxu0 0
    %1062 = vmatpush2.bf16.msra.mxu0 0
    %1063 = vmatprep.subr.bf16.mxu0 0
    %1064 = vmatpush2.bf16.msra.mxu0 0
    %1065 = vmatprep.subr.bf16.mxu0 0
    %1066 = vmatpush2.bf16.msra.mxu0 0
    %1067 = vmatprep.mubr.bf16.mxu0 0
    %1068 = vmatmul.mubr.bf16.gmra.mxu0 %v164
    %v1069 = vpop.f32.mrf.mxu0
    %v1070 = vadd.f32 %v985, %v1069
    %v1071 = vpop.f32.mrf.mxu0
    %v1072 = vpop.f32.mrf.mxu0
    %v1073 = vadd.f32 %v985, %v1072
    %v1074 = vpop.f32.mrf.mxu0
    %1075 = vmatprep.mubr.bf16.mxu0 0
    %1076 = vmatmul.mubr.bf16.gmra.mxu0 %v165
    %v1077 = vpop.f32.mrf.mxu0
    %v1078 = vadd.f32 %v985, %v1077
    %v1079 = vpop.f32.mrf.mxu0
    %v1080 = vpop.f32.mrf.mxu0
    %v1081 = vadd.f32 %v985, %v1080
    %v1082 = vpop.f32.mrf.mxu0
    %1083 = vdwg.mxu0
    %v1084 = vadd.f32 %v960, %v1070
    %v1085 = vadd.f32 %v961, %v1073
    %v1086 = vadd.f32 %v962, %v1078
    %v1087 = vadd.f32 %v963, %v1081
    %v1088 = vmax.f32 %v1084, 0.0
    %v1089 = vmax.f32 %v1085, 0.0
    %v1090 = vmax.f32 %v1086, 0.0
    %v1091 = vmax.f32 %v1087, 0.0
    %1092 = vst [vmem:[#allocation10] sm:$0xff] %v1088
    %1093 = vst [vmem:[#allocation10 + $0x8] sm:$0xff] %v1089
    %1094 = vst [vmem:[#allocation10 + $0x10] sm:$0xff] %v1090
    %1095 = vst [vmem:[#allocation10 + $0x18] sm:$0xff] %v1091
    // Predicated region
    $region46: #{tpu_custom_call.1} parent=1 // pred_check
      _
    $region47: #{tpu_custom_call.1} parent=1 // pred_check_branch
      %1097 = sbr.rel (0) target = $region49
    $region48: #{tpu_custom_call.1} parent=1 // pred_region
      %s1099 = ssub.s32 512, 512
      %1100 = vsyncadd [#allocation4], %s1099
      %s1101 = sshll.u32 [#allocation10], 4
      %s1102 = int_to_ptr.vmem [resolvable:$true] %s1101
      %1107 = dma.vmem_to_hbm [thread:$0]  %s1102, 512, %s7, [#allocation4], 128, 128, 8
    $region49: #{tpu_custom_call.1} parent=1 // pred_fallthru
      _
    // Predicated region
    $region50: #{tpu_custom_call.1} parent=1 // pred_check
      _
    $region51: #{tpu_custom_call.1} parent=1 // pred_check_branch
      %1109 = sbr.rel (0) target = $region53
    $region52: #{tpu_custom_call.1} parent=1 // pred_region
      %1110 = dma.done [#allocation4], 512
    $region53: #{tpu_custom_call.1} parent=1 // pred_fallthru
      _
    %1111 = vsyncpa [#allocation3], 1
    %1112 = vsyncpa [#allocation6], 1
    %1113 = vsyncpa [#allocation9], 1
    %1114 = vsyncpa [#allocation4], 1

</llo_original>
